<compile_context>
chip_gen: v6e
topology: v6e:2x2x1
jax: 0.10.0
libtpu: 0.0.40
codegen_flags: <defaults>
</compile_context>

<pallas_src>
import jax
import jax.numpy as jnp
from jax.experimental import pallas as pl
from jax.experimental.pallas import tpu as pltpu


def _round_up(x, m):
    return (x + m - 1) // m * m


def _largest_aligned_divisor(total, base, limit):
    """Largest divisor of `total` that is a multiple of `base` and <= limit.

    `total` must be a multiple of `base`; result is at least `base`.
    """
    limit = max(limit, base)
    best = base
    d = base
    while d <= min(total, limit):
        if total % d == 0:
            best = d
        d += base
    return best


def _tile_config(compute_itemsize):
    """Per-generation tile targets + scoped-VMEM budget, keyed on compute dtype."""
    # TODO(synk): device_kind is read at trace time; under AOT / heterogeneous
    # setups pass tm/tn/tk explicitly instead of relying on this probe.
    try:
        kind = jax.devices()[0].device_kind.lower()
    except Exception:  # pragma: no cover - defensive fallback
        kind = ""
    if compute_itemsize >= 4:
        # f32 opt-out path: halve tiles to keep a similar VMEM footprint.
        base = dict(tm=256, tn=512, tk=512, k_single=2048)
    else:
        # bf16 (default): big lane-dense tiles -> high arithmetic intensity.
        base = dict(tm=512, tn=1024, tk=512, k_single=4096)
    if "v5 lite" in kind or "v5e" in kind or "v5litepod" in kind:
        base.update(tn=min(base["tn"], 512), vmem=64 << 20)
    elif "v7" in kind:
        base.update(vmem=48 << 20)  # 64 MiB physical per TC on v7x
    else:
        base.update(vmem=96 << 20)  # v6e / default: 128 MiB VMEM
    return base


def _conv1d_kernel_single_k(x_ref, w_ref, b_ref, o_ref):
    # Whole (padded) K in one tile: no scratch / no init-finalize needed.
    acc = jnp.dot(x_ref[...], w_ref[...], preferred_element_type=jnp.float32)
    o_ref[...] = (acc + b_ref[...].astype(jnp.float32)).astype(o_ref.dtype)


def _conv1d_kernel_acc(x_ref, w_ref, b_ref, o_ref, acc_ref):
    # x_ref: (tm, tk), w_ref: (tk, tn), b_ref: (1, tn), o_ref: (tm, tn),
    # acc_ref: (tm, tn) f32 scratch persistent across the K ("arbitrary") axis.
    k = pl.program_id(2)

    @pl.when(k == 0)
    def _():
        acc_ref[...] = jnp.zeros_like(acc_ref)

    acc_ref[...] += jnp.dot(
        x_ref[...], w_ref[...], preferred_element_type=jnp.float32
    )

    @pl.when(k == pl.num_programs(2) - 1)
    def _():
        o_ref[...] = (acc_ref[...] + b_ref[...].astype(jnp.float32)).astype(
            o_ref.dtype
        )


def conv1d(x, weight, bias, *, compute_dtype=None, tm=None, tn=None, tk=None):
    """GPT-2 Conv1D forward: x[..., nx] @ weight[nx, nf] + bias[nf]."""
    nx, nf = weight.shape
    assert x.shape[-1] == nx
    size_out = x.shape[:-1] + (nf,)
    out_dtype = x.dtype

    # bf16 operands by default (f32 accumulation kept inside the kernel).
    if compute_dtype is None:
        if jnp.dtype(x.dtype) in (jnp.dtype(jnp.float32), jnp.dtype(jnp.bfloat16)):
            compute_dtype = jnp.bfloat16
        else:
            compute_dtype = x.dtype
    compute_dtype = jnp.dtype(compute_dtype)

    # TODO(synk): on v7x, optionally store weights as fp8 (e4m3) with
    # per-output-channel scales and dequant in the epilogue (quality permitting).
    x2d = x.reshape(-1, nx).astype(compute_dtype)
    w = weight.astype(compute_dtype)
    M = x2d.shape[0]

    cfg = _tile_config(compute_dtype.itemsize)
    sublane = {4: 8, 2: 16, 1: 32}.get(compute_dtype.itemsize, 8)

    # --- K / N: pad only to lane granularity (128); pick tk/tn as divisors of
    # the padded dims so no tile-level over-padding occurs.
    Kp = _round_up(nx, 128)
    Np = _round_up(nf, 128)
    if tn is None:
        tn = _largest_aligned_divisor(Np, 128, cfg["tn"])
    if tk is None:
        tk = Kp if Kp <= cfg["k_single"] else _largest_aligned_divisor(
            Kp, 128, cfg["tk"]
        )
    assert Np % tn == 0 and tn % 128 == 0
    assert Kp % tk == 0 and tk % 128 == 0

    # --- M: clamp the tile to the problem size, pad M to a tile multiple
    # (activation-side padding only; bounded by < tm rows).
    if tm is None:
        tm = cfg["tm"]
    tm = min(tm, _round_up(M, sublane))
    assert tm % sublane == 0
    Mp = _round_up(M, tm)

    # Minimal zero-padding (zeros don't perturb the matmul / bias add).  In a
    # real model, pre-pad / pre-cast weight & bias once at init instead.
    if (Mp, Kp) != (M, nx):
        x2d = jnp.pad(x2d, ((0, Mp - M), (0, Kp - nx)))
    if (Kp, Np) != (nx, nf):
        w = jnp.pad(w, ((0, Kp - nx), (0, Np - nf)))
    b2d = bias.reshape(1, nf)
    if Np != nf:
        b2d = jnp.pad(b2d, ((0, 0), (0, Np - nf)))

    grid_m, grid_n, grid_k = Mp // tm, Np // tn, Kp // tk

    # Grid order: K (reduction) last; of the two "parallel" axes put the one
    # with more blocks first purely for balanced megacore sharding.  Order does
    # not change HBM traffic (with K innermost, weights are re-streamed
    # grid_m times and activations grid_n times either way).
    n_outer = grid_n >= grid_m

    if grid_k == 1:
        kernel = _conv1d_kernel_single_k
        scratch = []
        dims = ("parallel", "parallel")
        if n_outer:
            grid = (grid_n, grid_m)
            x_map = lambda j, i: (i, 0)
            w_map = lambda j, i: (0, j)
            b_map = lambda j, i: (0, j)
            o_map = lambda j, i: (i, j)
        else:
            grid = (grid_m, grid_n)
            x_map = lambda i, j: (i, 0)
            w_map = lambda i, j: (0, j)
            b_map = lambda i, j: (0, j)
            o_map = lambda i, j: (i, j)
    else:
        kernel = _conv1d_kernel_acc
        scratch = [pltpu.VMEM((tm, tn), jnp.float32)]
        dims = ("parallel", "parallel", "arbitrary")
        # TODO(synk): on v6e, sweep pipeline_mode=pl.Buffered(3) on the weight
        # spec once tiles are finalized (few-% win, ample VMEM headroom).
        if n_outer:
            grid = (grid_n, grid_m, grid_k)
            x_map = lambda j, i, k: (i, k)
            w_map = lambda j, i, k: (k, j)
            b_map = lambda j, i, k: (0, j)
            o_map = lambda j, i, k: (i, j)
        else:
            grid = (grid_m, grid_n, grid_k)
            x_map = lambda i, j, k: (i, k)
            w_map = lambda i, j, k: (k, j)
            b_map = lambda i, j, k: (0, j)
            o_map = lambda i, j, k: (i, j)

    itemsize = compute_dtype.itemsize
    cost = pl.CostEstimate(
        flops=2 * M * nx * nf,
        transcendentals=0,
        bytes_accessed=(
            M * nx * itemsize
            + nx * nf * itemsize
            + nf * jnp.dtype(bias.dtype).itemsize
            + M * nf * jnp.dtype(out_dtype).itemsize
        ),
    )

    out = pl.pallas_call(
        kernel,
        out_shape=jax.ShapeDtypeStruct((Mp, Np), out_dtype),
        grid_spec=pltpu.PrefetchScalarGridSpec(
            num_scalar_prefetch=0,
            grid=grid,
            in_specs=[
                pl.BlockSpec((tm, tk), x_map),   # activations
                pl.BlockSpec((tk, tn), w_map),   # weight
                pl.BlockSpec((1, tn), b_map),    # bias
            ],
            out_specs=pl.BlockSpec((tm, tn), o_map),
            scratch_shapes=scratch,
        ),
        compiler_params=pltpu.CompilerParams(
            dimension_semantics=dims,
            vmem_limit_bytes=cfg["vmem"],
        ),
        cost_estimate=cost,
    )(x2d, w, b2d)

    if (Mp, Np) != (M, nf):
        out = out[:M, :nf]
    return out.reshape(size_out)


if __name__ == "__main__":
    # Small shapes consistent with GPT-2 usage: x is (batch, seq, nx).
    batch, seq, nx, nf = 2, 8, 32, 64

    key = jax.random.PRNGKey(0)
    kx, kw = jax.random.split(key)

    # Deterministic "parameters" mirroring nn.init.normal_(std=0.02), zero bias.
    weight = 0.02 * jax.random.normal(kw, (nx, nf), dtype=jnp.float32)
    bias = jnp.zeros((nf,), dtype=jnp.float32)

    x = jax.random.normal(kx, (batch, seq, nx), dtype=jnp.float32)

    # Reference (plain JAX, f32).
    y_ref = (x.reshape(-1, nx) @ weight + bias).reshape(batch, seq, nf)

    # Default path: bf16 compute, f32 accumulation, f32 output.
    y = conv1d(x, weight, bias)
    y = jax.block_until_ready(y)
    assert y.shape == (batch, seq, nf)
    assert jnp.allclose(y, y_ref, atol=2e-2, rtol=5e-2)

    # Opt-out path: full f32 compute, tight tolerance.
    y32 = conv1d(x, weight, bias, compute_dtype=jnp.float32)
    y32 = jax.block_until_ready(y32)
    assert jnp.allclose(y32, y_ref, atol=1e-5, rtol=1e-5)

    print("KERNEL_OK")
</pallas_src>

<mosaic_0001>
module attributes {stable_mosaic.version = 11 : i64} {
  func.func @_conv1d_kernel_single_k(%arg0: i32, %arg1: i32, %arg2: memref<16x128xbf16, #tpu.memory_space<vmem>>, %arg3: memref<128x128xbf16, #tpu.memory_space<vmem>>, %arg4: memref<1x128xf32, #tpu.memory_space<vmem>>, %arg5: memref<16x128xf32, #tpu.memory_space<vmem>>) attributes {dimension_semantics = [#tpu.dimension_semantics<parallel>, #tpu.dimension_semantics<parallel>], iteration_bounds = array<i64: 1, 1>, scalar_prefetch = 0 : i64, scratch_operands = 0 : i64, tpu.core_type = #tpu.core_type<tc>, window_params = [{transform_indices = @transform_0, window_bounds = array<i64: 16, 128>}, {transform_indices = @transform_1, window_bounds = array<i64: 128, 128>}, {transform_indices = @transform_2, window_bounds = array<i64: 1, 128>}, {transform_indices = @transform_3, window_bounds = array<i64: 16, 128>}]} {
    %c0 = arith.constant 0 : index
    %c0_0 = arith.constant 0 : index
    %0 = vector.load %arg2[%c0, %c0_0] : memref<16x128xbf16, #tpu.memory_space<vmem>>, vector<16x128xbf16>
    %c0_1 = arith.constant 0 : index
    %c0_2 = arith.constant 0 : index
    %1 = vector.load %arg3[%c0_1, %c0_2] : memref<128x128xbf16, #tpu.memory_space<vmem>>, vector<128x128xbf16>
    %cst = arith.constant dense<0.000000e+00> : vector<16x128xf32>
    %2 = tpu.matmul %0, %1, %cst {dimension_numbers = #tpu.dot_dimension_numbers<[1], [0], [0], [1], [0, 0, 1, 1], [], []>} : vector<16x128xbf16>, vector<128x128xbf16>, vector<16x128xf32> -> vector<16x128xf32>
    %c0_3 = arith.constant 0 : index
    %c0_4 = arith.constant 0 : index
    %3 = vector.load %arg4[%c0_3, %c0_4] : memref<1x128xf32, #tpu.memory_space<vmem>>, vector<1x128xf32>
    %4 = vector.broadcast %3 : vector<1x128xf32> to vector<16x128xf32>
    %5 = arith.addf %2, %4 : vector<16x128xf32>
    %c0_5 = arith.constant 0 : index
    %c0_6 = arith.constant 0 : index
    %6 = vector.load %arg5[%c0_5, %c0_6] : memref<16x128xf32, #tpu.memory_space<vmem>>, vector<16x128xf32>
    tpu.vector_store %arg5[%c0_5, %c0_6], %5 {strides = array<i32>} : memref<16x128xf32, #tpu.memory_space<vmem>>, vector<16x128xf32>,
    return
  }
  func.func @transform_0(%arg0: i32, %arg1: i32) -> (i32, i32) {
    %c0_i32 = arith.constant 0 : i32
    %c0_i32_0 = arith.constant 0 : i32
    return %arg1, %c0_i32 : i32, i32
  }
  func.func @transform_1(%arg0: i32, %arg1: i32) -> (i32, i32) {
    %c0_i32 = arith.constant 0 : i32
    %c0_i32_0 = arith.constant 0 : i32
    return %c0_i32, %arg0 : i32, i32
  }
  func.func @transform_2(%arg0: i32, %arg1: i32) -> (i32, i32) {
    %c0_i32 = arith.constant 0 : i32
    %c0_i32_0 = arith.constant 0 : i32
    return %c0_i32, %arg0 : i32, i32
  }
  func.func @transform_3(%arg0: i32, %arg1: i32) -> (i32, i32) {
    %c0_i32 = arith.constant 0 : i32
    return %arg1, %arg0 : i32, i32
  }
}

</mosaic_0001>

<llo_original>
// kernel: tpu_custom_call.1
$region0: #{tpu_custom_call.1}
  #allocation0 [shape = 'u32[]', space=smem, size = 0x4, offset = 0x4, fixed_abs, tag = 'smem constant byte address 0x4 - core index']
  #allocation1 [shape = 'u32[144,128]{1,0:T(1,128)}', space=vmem, size = 0x12000, scoped, tag = 'internal scratch']
  %s0 = inlined_call_operand.hbm [shape: bf16[16,128], index: 0, kind: input, shape index: {}]
  %s1 = inlined_call_operand.hbm [shape: bf16[128,128], index: 1, kind: input, shape index: {}]
  %s2 = inlined_call_operand.vmem [shape: f32[1,128], index: 2, kind: input, shape index: {}]
  %s3 = inlined_call_operand.hbm [shape: f32[16,128], index: 3, kind: output, shape index: {}]
  %s4 = sld [smem:[#allocation0]]
  $region30: #{tpu_custom_call.1} parent=0
    _
  %s6 = ssub.s32 1, %s4
  %s7 = scalar_select 0, %s6, %s4
  $region1: #{tpu_custom_call.1} parent=0
    #allocation2 [shape = 'u8[4096]{0}', space=vmem, size = 0x1000, scoped, tag = 'input window, operand 0, single buffered']
    #allocation3 [shape = 's32[1]{0}', space=sflag, size = 0x4, scoped, tag = 'scoped memory for tpu_custom_call.1']
    #allocation4 [shape = 's32[1]{0}', space=sflag, size = 0x4, scoped, tag = 'scoped memory for tpu_custom_call.1']
    #allocation5 [shape = 'u8[32768]{0}', space=vmem, size = 0x8000, scoped, tag = 'input window, operand 1, single buffered']
    #allocation6 [shape = 's32[1]{0}', space=sflag, size = 0x4, scoped, tag = 'scoped memory for tpu_custom_call.1']
    #allocation7 [shape = 'u8[8192]{0}', space=vmem, size = 0x2000, scoped, tag = 'output window, operand 0, single buffered']
    %8 = vsyncpa [#allocation3], 0
    %9 = vsyncpa [#allocation6], 0
    %10 = vsyncpa [#allocation4], 0
    // Predicated region
    $region2: #{tpu_custom_call.1} parent=1 // pred_check
      _
    $region3: #{tpu_custom_call.1} parent=1 // pred_check_branch
      %12 = sbr.rel (0) target = $region5
    $region4: #{tpu_custom_call.1} parent=1 // pred_region
      %s14 = ssub.s32 128, 128
      %15 = vsyncadd [#allocation3], %s14
      %s16 = sshll.u32 [#allocation2], 4
      %s17 = int_to_ptr.vmem [resolvable:$true] %s16
      %22 = dma.hbm_to_vmem [thread:$0]  %s0, 128, %s17, [#allocation3], 64, 64, 4
    $region5: #{tpu_custom_call.1} parent=1 // pred_fallthru
      _
    // Predicated region
    $region6: #{tpu_custom_call.1} parent=1 // pred_check
      _
    $region7: #{tpu_custom_call.1} parent=1 // pred_check_branch
      %24 = sbr.rel (0) target = $region9
    $region8: #{tpu_custom_call.1} parent=1 // pred_region
      %s26 = ssub.s32 1024, 1024
      %27 = vsyncadd [#allocation6], %s26
      %s28 = sshll.u32 [#allocation5], 4
      %s29 = int_to_ptr.vmem [resolvable:$true] %s28
      %34 = dma.hbm_to_vmem [thread:$0]  %s1, 1024, %s29, [#allocation6], 64, 64, 4
    $region9: #{tpu_custom_call.1} parent=1 // pred_fallthru
      _
    // Predicated region
    $region10: #{tpu_custom_call.1} parent=1 // pred_check
      _
    $region11: #{tpu_custom_call.1} parent=1 // pred_check_branch
      %36 = sbr.rel (0) target = $region13
    $region12: #{tpu_custom_call.1} parent=1 // pred_region
      _
    $region13: #{tpu_custom_call.1} parent=1 // pred_fallthru
      _
    // Predicated region
    $region14: #{tpu_custom_call.1} parent=1 // pred_check
      _
    $region15: #{tpu_custom_call.1} parent=1 // pred_check_branch
      %38 = sbr.rel (0) target = $region17
    $region16: #{tpu_custom_call.1} parent=1 // pred_region
      %39 = dma.done [#allocation3], 128
    $region17: #{tpu_custom_call.1} parent=1 // pred_fallthru
      _
    // Predicated region
    $region18: #{tpu_custom_call.1} parent=1 // pred_check
      _
    $region19: #{tpu_custom_call.1} parent=1 // pred_check_branch
      %41 = sbr.rel (0) target = $region21
    $region20: #{tpu_custom_call.1} parent=1 // pred_region
      %42 = dma.done [#allocation6], 1024
    $region21: #{tpu_custom_call.1} parent=1 // pred_fallthru
      _
    %v44 = vld [vmem:[#allocation2] sm:$0xf]
    %v45 = vld [vmem:[#allocation2 + $0x4] sm:$0xf]
    %v46 = vld [vmem:[#allocation5] sm:$0xf]
    %v47 = vld [vmem:[#allocation5 + $0x4] sm:$0xf]
    %v48 = vld [vmem:[#allocation5 + $0x8] sm:$0xf]
    %v49 = vld [vmem:[#allocation5 + $0xc] sm:$0xf]
    %v50 = vld [vmem:[#allocation5 + $0x10] sm:$0xf]
    %v51 = vld [vmem:[#allocation5 + $0x14] sm:$0xf]
    %v52 = vld [vmem:[#allocation5 + $0x18] sm:$0xf]
    %v53 = vld [vmem:[#allocation5 + $0x1c] sm:$0xf]
    %v54 = vld [vmem:[#allocation5 + $0x20] sm:$0xf]
    %v55 = vld [vmem:[#allocation5 + $0x24] sm:$0xf]
    %v56 = vld [vmem:[#allocation5 + $0x28] sm:$0xf]
    %v57 = vld [vmem:[#allocation5 + $0x2c] sm:$0xf]
    %v58 = vld [vmem:[#allocation5 + $0x30] sm:$0xf]
    %v59 = vld [vmem:[#allocation5 + $0x34] sm:$0xf]
    %v60 = vld [vmem:[#allocation5 + $0x38] sm:$0xf]
    %v61 = vld [vmem:[#allocation5 + $0x3c] sm:$0xf]
    %v62 = vld [vmem:[%s2] sm:$0x1]
    %v64 = vlaneseq
    %v65 = vshrl.u32 %v64, 7
    %v66 = vsub.s32 0, %v65
    %v67 = vrot.slane %v62, %v66
    %v71 = vunpack.c.l.b16 %v44
    %v72 = vunpack.c.l.b16 %v45
    %v73 = vpack.c.b16 %v72, %v71
    %v91 = vunpack.c.l.b16 %v46
    %v92 = vunpack.c.l.b16 %v47
    %v93 = vunpack.c.l.b16 %v48
    %v94 = vunpack.c.l.b16 %v49
    %v95 = vunpack.c.l.b16 %v50
    %v96 = vunpack.c.l.b16 %v51
    %v97 = vunpack.c.l.b16 %v52
    %v98 = vunpack.c.l.b16 %v53
    %v99 = vunpack.c.l.b16 %v54
    %v100 = vunpack.c.l.b16 %v55
    %v101 = vunpack.c.l.b16 %v56
    %v102 = vunpack.c.l.b16 %v57
    %v103 = vunpack.c.l.b16 %v58
    %v104 = vunpack.c.l.b16 %v59
    %v105 = vunpack.c.l.b16 %v60
    %v106 = vunpack.c.l.b16 %v61
    %v107 = vpack.c.b16 %v92, %v91
    %v108 = vpack.c.b16 %v94, %v93
    %v109 = vpack.c.b16 %v96, %v95
    %v110 = vpack.c.b16 %v98, %v97
    %v111 = vpack.c.b16 %v100, %v99
    %v112 = vpack.c.b16 %v102, %v101
    %v113 = vpack.c.b16 %v104, %v103
    %v114 = vpack.c.b16 %v106, %v105
    %123 = vmatprep.subr.bf16.mxu0 0
    %124 = vmatpush1.bf16.msra.mxu0 %v114
    %125 = vmatprep.subr.bf16.mxu0 0
    %126 = vmatpush1.bf16.msra.mxu0 %v113
    %127 = vmatprep.subr.bf16.mxu0 0
    %128 = vmatpush1.bf16.msra.mxu0 %v112
    %129 = vmatprep.subr.bf16.mxu0 0
    %130 = vmatpush1.bf16.msra.mxu0 %v111
    %131 = vmatprep.subr.bf16.mxu0 0
    %132 = vmatpush1.bf16.msra.mxu0 %v110
    %133 = vmatprep.subr.bf16.mxu0 0
    %134 = vmatpush1.bf16.msra.mxu0 %v109
    %135 = vmatprep.subr.bf16.mxu0 0
    %136 = vmatpush1.bf16.msra.mxu0 %v108
    %137 = vmatprep.subr.bf16.mxu0 0
    %138 = vmatpush1.bf16.msra.mxu0 %v107
    %139 = vmatprep.subr.bf16.mxu0 0
    %140 = vmatpush2.bf16.msra.mxu0 0
    %141 = vmatprep.subr.bf16.mxu0 0
    %142 = vmatpush2.bf16.msra.mxu0 0
    %143 = vmatprep.subr.bf16.mxu0 0
    %144 = vmatpush2.bf16.msra.mxu0 0
    %145 = vmatprep.subr.bf16.mxu0 0
    %146 = vmatpush2.bf16.msra.mxu0 0
    %147 = vmatprep.subr.bf16.mxu0 0
    %148 = vmatpush2.bf16.msra.mxu0 0
    %149 = vmatprep.subr.bf16.mxu0 0
    %150 = vmatpush2.bf16.msra.mxu0 0
    %151 = vmatprep.subr.bf16.mxu0 0
    %152 = vmatpush2.bf16.msra.mxu0 0
    %153 = vmatprep.subr.bf16.mxu0 0
    %154 = vmatpush2.bf16.msra.mxu0 0
    %155 = vmatprep.mubr.bf16.mxu0 0
    %156 = vmatmul.mubr.bf16.gmra.mxu0 %v73
    %v157 = vpop.f32.mrf.mxu0
    %v158 = vadd.f32 %v67, %v157
    %v159 = vpop.f32.mrf.mxu0
    %v160 = vpop.f32.mrf.mxu0
    %v161 = vadd.f32 %v67, %v160
    %v162 = vpop.f32.mrf.mxu0
    %163 = vdwg.mxu0
    %164 = vst [vmem:[#allocation7] sm:$0xff] %v158
    %165 = vst [vmem:[#allocation7 + $0x8] sm:$0xff] %v161
    // Predicated region
    $region22: #{tpu_custom_call.1} parent=1 // pred_check
      _
    $region23: #{tpu_custom_call.1} parent=1 // pred_check_branch
      %167 = sbr.rel (0) target = $region25
    $region24: #{tpu_custom_call.1} parent=1 // pred_region
      %s169 = ssub.s32 256, 256
      %170 = vsyncadd [#allocation4], %s169
      %s171 = sshll.u32 [#allocation7], 4
      %s172 = int_to_ptr.vmem [resolvable:$true] %s171
      %177 = dma.vmem_to_hbm [thread:$0]  %s172, 256, %s3, [#allocation4], 128, 128, 8
    $region25: #{tpu_custom_call.1} parent=1 // pred_fallthru
      _
    // Predicated region
    $region26: #{tpu_custom_call.1} parent=1 // pred_check
      _
    $region27: #{tpu_custom_call.1} parent=1 // pred_check_branch
      %179 = sbr.rel (0) target = $region29
    $region28: #{tpu_custom_call.1} parent=1 // pred_region
      %180 = dma.done [#allocation4], 256
    $region29: #{tpu_custom_call.1} parent=1 // pred_fallthru
      _
    %181 = vsyncpa [#allocation3], 1
    %182 = vsyncpa [#allocation6], 1
    %183 = vsyncpa [#allocation4], 1

</llo_original>
